<compile_context>
chip_gen: v6e
topology: v6e:2x2x1
jax: 0.10.0
libtpu: 0.0.40
codegen_flags: <defaults>
</compile_context>

<pallas_src>
import functools
import math

import jax
import jax.numpy as jnp
from jax.experimental import pallas as pl
from jax.experimental.pallas import tpu as pltpu


LANE = 128                              # lane-dense padding for the head output
# Scoped-VMEM budget: lets v5e/v6e run tm=512 resident-weight tiles, and stays
# inside v7x's 64 MiB physical VMEM with headroom for double-buffering.
VMEM_LIMIT_BYTES = 48 * 1024 * 1024


def _round_up(x, m):
    return ((x + m - 1) // m) * m


def _row_tile(m, pref):
    """Largest multiple-of-8 row tile <= pref that divides m (m if it fits)."""
    if m <= pref:
        return m
    t = (pref // 8) * 8
    while t > 8 and m % t:
        t -= 8
    return t if m % t == 0 else m


# ----------------------------- Pallas kernels -----------------------------

def _matmul_kernel(x_ref, w_ref, b_ref, o_ref, *, act):
    """y = act(x @ w + b); weight block is resident (constant index_map)."""
    y = jnp.dot(x_ref[...], w_ref[...], preferred_element_type=jnp.float32)
    y = y + b_ref[...]
    if act == "relu":
        y = jnp.maximum(y, 0.0)
    elif act == "gelu":
        # TODO(synk): HF BERT uses erf-GELU; tanh approximation used here.
        y = jax.nn.gelu(y, approximate=True)
    o_ref[...] = y.astype(o_ref.dtype)


def dense(x, w, b, act="none", tm=512):
    """x:(M,K) bf16, w:(K,N) bf16 (VMEM-resident), b:(N,) f32 -> (M,N) x.dtype."""
    M, K = x.shape
    K2, N = w.shape
    assert K == K2
    tm = _row_tile(M, tm)
    return pl.pallas_call(
        functools.partial(_matmul_kernel, act=act),
        out_shape=jax.ShapeDtypeStruct((M, N), x.dtype),
        grid=(M // tm,),
        in_specs=[
            pl.BlockSpec((tm, K), lambda i: (i, 0)),
            pl.BlockSpec((K, N), lambda i: (0, 0)),   # resident weight: one DMA
            pl.BlockSpec((1, N), lambda i: (0, 0)),   # resident bias
        ],
        out_specs=pl.BlockSpec((tm, N), lambda i: (i, 0)),
        compiler_params=pltpu.CompilerParams(
            dimension_semantics=("parallel",),
            vmem_limit_bytes=VMEM_LIMIT_BYTES),
    )(x, w, b.reshape(1, N).astype(jnp.float32))


def _matmul_res_ln_kernel(x_ref, w_ref, b_ref, r_ref, g_ref, be_ref,
                          o_ref, *, eps):
    """y = LayerNorm(x @ w + b + residual); full K per step, resident weight."""
    y = jnp.dot(x_ref[...], w_ref[...], preferred_element_type=jnp.float32)
    y = y + b_ref[...] + r_ref[...].astype(jnp.float32)
    mean = jnp.mean(y, axis=-1, keepdims=True)
    var = jnp.mean(jnp.square(y - mean), axis=-1, keepdims=True)
    o_ref[...] = ((y - mean) * jax.lax.rsqrt(var + eps) * g_ref[...]
                  + be_ref[...]).astype(o_ref.dtype)


def dense_res_ln(x, w, b, res, gamma, beta, eps=1e-12, tm=512):
    """Fused matmul + bias + residual + LayerNorm (grid over M only)."""
    M, K = x.shape
    K2, N = w.shape
    assert K == K2 and res.shape == (M, N)
    tm = _row_tile(M, tm)
    return pl.pallas_call(
        functools.partial(_matmul_res_ln_kernel, eps=eps),
        out_shape=jax.ShapeDtypeStruct((M, N), x.dtype),
        grid=(M // tm,),
        in_specs=[
            pl.BlockSpec((tm, K), lambda i: (i, 0)),
            pl.BlockSpec((K, N), lambda i: (0, 0)),   # resident weight
            pl.BlockSpec((1, N), lambda i: (0, 0)),
            pl.BlockSpec((tm, N), lambda i: (i, 0)),  # residual
            pl.BlockSpec((1, N), lambda i: (0, 0)),
            pl.BlockSpec((1, N), lambda i: (0, 0)),
        ],
        out_specs=pl.BlockSpec((tm, N), lambda i: (i, 0)),
        compiler_params=pltpu.CompilerParams(
            dimension_semantics=("parallel",),
            vmem_limit_bytes=VMEM_LIMIT_BYTES),
    )(x, w, b.reshape(1, N).astype(jnp.float32), res,
      gamma.reshape(1, N), beta.reshape(1, N))


def _ln_kernel(x_ref, g_ref, b_ref, o_ref, *, eps):
    x = x_ref[...].astype(jnp.float32)
    mean = jnp.mean(x, axis=-1, keepdims=True)
    var = jnp.mean(jnp.square(x - mean), axis=-1, keepdims=True)
    o_ref[...] = ((x - mean) * jax.lax.rsqrt(var + eps) * g_ref[...]
                  + b_ref[...]).astype(o_ref.dtype)


def layernorm(x, gamma, beta, out_dtype=jnp.bfloat16, eps=1e-12, tm=512):
    """Standalone LN (embeddings only)."""
    M, H = x.shape
    tm = _row_tile(M, tm)
    return pl.pallas_call(
        functools.partial(_ln_kernel, eps=eps),
        out_shape=jax.ShapeDtypeStruct((M, H), out_dtype),
        grid=(M // tm,),
        in_specs=[
            pl.BlockSpec((tm, H), lambda i: (i, 0)),
            pl.BlockSpec((1, H), lambda i: (0, 0)),
            pl.BlockSpec((1, H), lambda i: (0, 0)),
        ],
        out_specs=pl.BlockSpec((tm, H), lambda i: (i, 0)),
        compiler_params=pltpu.CompilerParams(
            dimension_semantics=("parallel",),
            vmem_limit_bytes=VMEM_LIMIT_BYTES),
    )(x, gamma.reshape(1, H), beta.reshape(1, H))


def _attn_kernel(q_ref, kv_ref, bias_ref, o_ref, *, heads, scale):
    """One (batch, q-tile) step; heads unrolled; per-head lane-aligned stores."""
    q_all = q_ref[...]                    # (tq, 3H) bf16, only the Q third used
    kv = kv_ref[...]                      # (S, 3H) bf16, only K/V thirds used
    bias = bias_ref[...][0]               # (1, S)  f32 additive mask bias
    H = kv.shape[1] // 3
    Dh = H // heads
    for h in range(heads):                # static, unrolled; no XLA transposes
        # softmax scale folded into q: (tq,Dh) VPU mul instead of (tq,S)
        q = q_all[:, h * Dh:(h + 1) * Dh] * scale            # stays bf16
        k = kv[:, H + h * Dh:H + (h + 1) * Dh]
        v = kv[:, 2 * H + h * Dh:2 * H + (h + 1) * Dh]
        # contract last dims -> no materialized K^T before the MXU
        s = jax.lax.dot_general(q, k, (((1,), (1,)), ((), ())),
                                preferred_element_type=jnp.float32)
        s = s + bias
        s = s - jnp.max(s, axis=-1, keepdims=True)
        p = jnp.exp(s)
        p = p * pl.reciprocal(jnp.sum(p, axis=-1, keepdims=True), approx=True)
        out_h = jnp.dot(p.astype(v.dtype), v, preferred_element_type=jnp.float32)
        # store each head as soon as it is computed: live set = one head
        o_ref[:, h * Dh:(h + 1) * Dh] = out_h.astype(o_ref.dtype)


def mha_attention(qkv2d, mask_bias, *, heads, batch, seq, tq=256):
    """qkv2d:(B*S,3H) bf16; mask_bias:(B,1,S) f32 -> context (B*S,H).

    Grid = (batch, q_tiles): Q rows are tiled (flash-style, K/V full S per
    step) so both v7x TensorCores get work even for small/odd batch.
    """
    BS, H3 = qkv2d.shape
    assert BS == batch * seq
    H = H3 // 3
    Dh = H // heads
    scale = 1.0 / math.sqrt(Dh)
    tq = min(tq, seq)
    if seq % tq:
        tq = seq
    n_q = seq // tq
    return pl.pallas_call(
        functools.partial(_attn_kernel, heads=heads, scale=scale),
        out_shape=jax.ShapeDtypeStruct((BS, H), qkv2d.dtype),
        grid=(batch, n_q),
        in_specs=[
            pl.BlockSpec((tq, H3), lambda b, qi: (b * n_q + qi, 0)),  # Q view
            pl.BlockSpec((seq, H3), lambda b, qi: (b, 0)),            # K/V view
            pl.BlockSpec((1, 1, seq), lambda b, qi: (b, 0, 0)),
        ],
        out_specs=pl.BlockSpec((tq, H), lambda b, qi: (b * n_q + qi, 0)),
        compiler_params=pltpu.CompilerParams(
            dimension_semantics=("parallel", "parallel"),
            vmem_limit_bytes=VMEM_LIMIT_BYTES),
    )(qkv2d, qkv2d, mask_bias)


def _head_kernel(x_ref, w1_ref, b1_ref, w2_ref, b2_ref, o_ref):
    """Fused classifier head: relu(x @ w1 + b1) @ w2 + b2 (lane-dense padded)."""
    h = jnp.dot(x_ref[...], w1_ref[...], preferred_element_type=jnp.float32)
    h = jnp.maximum(h + b1_ref[...], 0.0)
    y = jnp.dot(h.astype(w2_ref.dtype), w2_ref[...],
                preferred_element_type=jnp.float32) + b2_ref[...]
    o_ref[...] = y.astype(o_ref.dtype)


def classifier_head(x, w1p, b1p, w2p, b2p, num_labels, tm=512):
    M, H = x.shape
    LP = w1p.shape[1]
    tm = _row_tile(M, tm)
    out = pl.pallas_call(
        _head_kernel,
        out_shape=jax.ShapeDtypeStruct((M, LP), jnp.float32),
        grid=(M // tm,),
        in_specs=[
            pl.BlockSpec((tm, H), lambda i: (i, 0)),
            pl.BlockSpec((H, LP), lambda i: (0, 0)),
            pl.BlockSpec((1, LP), lambda i: (0, 0)),
            pl.BlockSpec((LP, LP), lambda i: (0, 0)),
            pl.BlockSpec((1, LP), lambda i: (0, 0)),
        ],
        out_specs=pl.BlockSpec((tm, LP), lambda i: (i, 0)),
        compiler_params=pltpu.CompilerParams(
            dimension_semantics=("parallel",),
            vmem_limit_bytes=VMEM_LIMIT_BYTES),
    )(x, w1p, b1p.reshape(1, LP), w2p, b2p.reshape(1, LP))
    return out[:, :num_labels]          # slice the padding away outside the kernel


# ------------------------------ model wiring ------------------------------

def init_params(key, *, vocab, max_pos, type_vocab, hidden, inter, layers,
                num_labels):
    keys = iter(jax.random.split(key, 8 * layers + 16))

    def nrm(shape, dtype=jnp.bfloat16, scale=0.02):
        return (scale * jax.random.normal(next(keys), shape)).astype(dtype)

    def zeros(shape):
        return jnp.zeros(shape, jnp.float32)

    def ones(shape):
        return jnp.ones(shape, jnp.float32)

    LP = LANE
    w1 = nrm((hidden, num_labels), dtype=jnp.float32)
    w2 = nrm((num_labels, num_labels), dtype=jnp.float32)

    p = {
        # embedding tables in bf16: gather/add in bf16, LN kernel upcasts
        "word_emb": nrm((vocab, hidden)),
        "pos_emb": nrm((max_pos, hidden)),
        "type_emb": nrm((type_vocab, hidden)),
        "emb_ln_g": ones((hidden,)), "emb_ln_b": zeros((hidden,)),
        "layers": [],
        "num_labels": num_labels,
        # classification head, zero-padded to 128 lanes (lane-dense stores)
        "lin1_w": jnp.pad(w1, ((0, 0), (0, LP - num_labels))).astype(jnp.bfloat16),
        "lin1_b": zeros((LP,)),
        "lin2_w": jnp.pad(w2, ((0, LP - num_labels),
                               (0, LP - num_labels))).astype(jnp.bfloat16),
        "lin2_b": zeros((LP,)),
    }
    for _ in range(layers):
        p["layers"].append({
            # fused QKV projection weight/bias
            "w_qkv": nrm((hidden, 3 * hidden)), "b_qkv": zeros((3 * hidden,)),
            "wo": nrm((hidden, hidden)), "bo": zeros((hidden,)),
            "ln1_g": ones((hidden,)), "ln1_b": zeros((hidden,)),
            "wi": nrm((hidden, inter)), "bi": zeros((inter,)),
            "wf": nrm((inter, hidden)), "bf": zeros((hidden,)),
            "ln2_g": ones((hidden,)), "ln2_b": zeros((hidden,)),
        })
    return p


def bert_model_forward(params, ids, masks, token_type_ids, *, heads):
    B, S0 = ids.shape
    H = params["word_emb"].shape[1]

    # pad sequence length to a multiple of 8 so all row-tiled blocks obey the
    # (8,128) layout preference; padded tokens are masked out of attention and
    # sliced off the logits.
    S = _round_up(max(S0, 8), 8)
    if S != S0:
        pad = S - S0
        ids = jnp.pad(ids, ((0, 0), (0, pad)))
        masks = jnp.pad(masks, ((0, 0), (0, pad)))
        token_type_ids = jnp.pad(token_type_ids, ((0, 0), (0, pad)))

    # --- embeddings (gathers are XLA glue, kept bf16; LN kernel upcasts) ---
    emb = (params["word_emb"][ids]
           + params["pos_emb"][jnp.arange(S)][None, :, :]
           + params["type_emb"][token_type_ids])
    x2d = layernorm(emb.reshape(B * S, H),
                    params["emb_ln_g"], params["emb_ln_b"])          # bf16

    # additive attention-mask bias, shape (B, 1, S)
    mask_bias = ((1.0 - masks.astype(jnp.float32)) * -1e9).reshape(B, 1, S)

    # --- transformer encoder layers ---
    for lp in params["layers"]:
        qkv = dense(x2d, lp["w_qkv"], lp["b_qkv"])                    # (B*S, 3H)
        ctx = mha_attention(qkv, mask_bias, heads=heads, batch=B, seq=S)
        x2d = dense_res_ln(ctx, lp["wo"], lp["bo"], x2d,
                           lp["ln1_g"], lp["ln1_b"])
        inter = dense(x2d, lp["wi"], lp["bi"], act="gelu")
        x2d = dense_res_ln(inter, lp["wf"], lp["bf"], x2d,
                           lp["ln2_g"], lp["ln2_b"])

    # --- head: drop1(id) -> linear1 -> relu -> drop2(id) -> linear2 (fused) ---
    logits = classifier_head(x2d, params["lin1_w"], params["lin1_b"],
                             params["lin2_w"], params["lin2_b"],
                             params["num_labels"])
    return logits.reshape(B, S, -1)[:, :S0, :]


# --------------------------------- main ------------------------------------

if __name__ == "__main__":
    B, S = 2, 8
    VOCAB, MAX_POS, TYPE_VOCAB = 64, 16, 2
    HIDDEN, HEADS, INTER, LAYERS = 32, 2, 64, 2
    NUM_LABELS = 5

    key = jax.random.PRNGKey(0)
    pkey, ikey = jax.random.split(key)

    params = init_params(pkey, vocab=VOCAB, max_pos=MAX_POS,
                         type_vocab=TYPE_VOCAB, hidden=HIDDEN, inter=INTER,
                         layers=LAYERS, num_labels=NUM_LABELS)

    ids = jax.random.randint(ikey, (B, S), 0, VOCAB, dtype=jnp.int32)
    masks = jnp.array([[1, 1, 1, 1, 1, 1, 0, 0],
                       [1, 1, 1, 1, 1, 1, 1, 1]], dtype=jnp.int32)
    token_type_ids = jnp.zeros((B, S), dtype=jnp.int32)

    out = bert_model_forward(params, ids, masks, token_type_ids, heads=HEADS)
    out = jax.block_until_ready(out)

    assert out.shape == (B, S, NUM_LABELS), out.shape
    assert jnp.all(jnp.isfinite(out))
    print("KERNEL_OK")
</pallas_src>

<mosaic_0001>
module attributes {stable_mosaic.version = 11 : i64} {
  func.func @_ln_kernel(%arg0: i32, %arg1: memref<16x32xbf16, #tpu.memory_space<vmem>>, %arg2: memref<1x32xf32, #tpu.memory_space<vmem>>, %arg3: memref<1x32xf32, #tpu.memory_space<vmem>>, %arg4: memref<16x32xbf16, #tpu.memory_space<vmem>>) attributes {dimension_semantics = [#tpu.dimension_semantics<parallel>], iteration_bounds = array<i64: 1>, scalar_prefetch = 0 : i64, scratch_operands = 0 : i64, tpu.core_type = #tpu.core_type<tc>, window_params = [{transform_indices = @transform_0, window_bounds = array<i64: 16, 32>}, {pipeline_mode = #tpu.pipeline_mode<synchronous>, transform_indices = @transform_1, window_bounds = array<i64: 1, 32>}, {pipeline_mode = #tpu.pipeline_mode<synchronous>, transform_indices = @transform_2, window_bounds = array<i64: 1, 32>}, {transform_indices = @transform_3, window_bounds = array<i64: 16, 32>}]} {
    %c0 = arith.constant 0 : index
    %c0_0 = arith.constant 0 : index
    %0 = vector.load %arg1[%c0, %c0_0] : memref<16x32xbf16, #tpu.memory_space<vmem>>, vector<16x32xbf16>
    %1 = arith.extf %0 : vector<16x32xbf16> to vector<16x32xf32>
    %cst = arith.constant dense<0.000000e+00> : vector<16xf32>
    %2 = vector.multi_reduction <add>, %1, %cst [1] : vector<16x32xf32> to vector<16xf32>
    %3 = vector.shape_cast %2 : vector<16xf32> to vector<16x1xf32>
    %cst_1 = arith.constant 3.200000e+01 : f32
    %4 = vector.broadcast %cst_1 : f32 to vector<16x1xf32>
    %5 = arith.divf %3, %4 : vector<16x1xf32>
    %6 = vector.broadcast %5 : vector<16x1xf32> to vector<16x32xf32>
    %7 = arith.subf %1, %6 : vector<16x32xf32>
    %8 = arith.mulf %7, %7 : vector<16x32xf32>
    %cst_2 = arith.constant dense<0.000000e+00> : vector<16xf32>
    %9 = vector.multi_reduction <add>, %8, %cst_2 [1] : vector<16x32xf32> to vector<16xf32>
    %10 = vector.shape_cast %9 : vector<16xf32> to vector<16x1xf32>
    %cst_3 = arith.constant 3.200000e+01 : f32
    %11 = vector.broadcast %cst_3 : f32 to vector<16x1xf32>
    %12 = arith.divf %10, %11 : vector<16x1xf32>
    %13 = vector.broadcast %5 : vector<16x1xf32> to vector<16x32xf32>
    %14 = arith.subf %1, %13 : vector<16x32xf32>
    %cst_4 = arith.constant 9.99999996E-13 : f32
    %15 = vector.broadcast %cst_4 : f32 to vector<16x1xf32>
    %16 = arith.addf %12, %15 : vector<16x1xf32>
    %17 = math.rsqrt %16 : vector<16x1xf32>
    %18 = vector.broadcast %17 : vector<16x1xf32> to vector<16x32xf32>
    %19 = arith.mulf %14, %18 : vector<16x32xf32>
    %c0_5 = arith.constant 0 : index
    %c0_6 = arith.constant 0 : index
    %20 = vector.load %arg2[%c0_5, %c0_6] : memref<1x32xf32, #tpu.memory_space<vmem>>, vector<1x32xf32>
    %21 = vector.broadcast %20 : vector<1x32xf32> to vector<16x32xf32>
    %22 = arith.mulf %19, %21 : vector<16x32xf32>
    %c0_7 = arith.constant 0 : index
    %c0_8 = arith.constant 0 : index
    %23 = vector.load %arg3[%c0_7, %c0_8] : memref<1x32xf32, #tpu.memory_space<vmem>>, vector<1x32xf32>
    %24 = vector.broadcast %23 : vector<1x32xf32> to vector<16x32xf32>
    %25 = arith.addf %22, %24 : vector<16x32xf32>
    %26 = arith.truncf %25 : vector<16x32xf32> to vector<16x32xbf16>
    %c0_9 = arith.constant 0 : index
    %c0_10 = arith.constant 0 : index
    %27 = vector.load %arg4[%c0_9, %c0_10] : memref<16x32xbf16, #tpu.memory_space<vmem>>, vector<16x32xbf16>
    tpu.vector_store %arg4[%c0_9, %c0_10], %26 {strides = array<i32>} : memref<16x32xbf16, #tpu.memory_space<vmem>>, vector<16x32xbf16>,
    return
  }
  func.func @transform_0(%arg0: i32) -> (i32, i32) {
    %c0_i32 = arith.constant 0 : i32
    %c0_i32_0 = arith.constant 0 : i32
    return %arg0, %c0_i32 : i32, i32
  }
  func.func @transform_1(%arg0: i32) -> (i32, i32) {
    %c0_i32 = arith.constant 0 : i32
    %c0_i32_0 = arith.constant 0 : i32
    %c0_i32_1 = arith.constant 0 : i32
    return %c0_i32, %c0_i32_0 : i32, i32
  }
  func.func @transform_2(%arg0: i32) -> (i32, i32) {
    %c0_i32 = arith.constant 0 : i32
    %c0_i32_0 = arith.constant 0 : i32
    %c0_i32_1 = arith.constant 0 : i32
    return %c0_i32, %c0_i32_0 : i32, i32
  }
  func.func @transform_3(%arg0: i32) -> (i32, i32) {
    %c0_i32 = arith.constant 0 : i32
    %c0_i32_0 = arith.constant 0 : i32
    return %arg0, %c0_i32 : i32, i32
  }
}

</mosaic_0001>

<llo_original>
// kernel: tpu_custom_call.1
$region0: #{tpu_custom_call.1}
  #allocation0 [shape = 'u32[]', space=smem, size = 0x4, offset = 0x4, fixed_abs, tag = 'smem constant byte address 0x4 - core index']
  #allocation1 [shape = 'u32[144,128]{1,0:T(1,128)}', space=vmem, size = 0x12000, scoped, tag = 'internal scratch']
  %s0 = inlined_call_operand.hbm [shape: bf16[16,32], index: 0, kind: input, shape index: {}]
  %s1 = inlined_call_operand.vmem [shape: f32[1,32], index: 1, kind: input, shape index: {}]
  %s2 = inlined_call_operand.vmem [shape: f32[1,32], index: 2, kind: input, shape index: {}]
  %s3 = inlined_call_operand.hbm [shape: bf16[16,32], index: 3, kind: output, shape index: {}]
  %s4 = sld [smem:[#allocation0]]
  $region26: #{tpu_custom_call.1} parent=0
    _
  %s6 = ssub.s32 1, %s4
  %s7 = scalar_select 0, %s6, %s4
  $region1: #{tpu_custom_call.1} parent=0
    #allocation2 [shape = 'u8[4096]{0}', space=vmem, size = 0x1000, scoped, tag = 'input window, operand 0, single buffered']
    #allocation3 [shape = 's32[1]{0}', space=sflag, size = 0x4, scoped, tag = 'scoped memory for tpu_custom_call.1']
    #allocation4 [shape = 's32[1]{0}', space=sflag, size = 0x4, scoped, tag = 'scoped memory for tpu_custom_call.1']
    #allocation5 [shape = 'u8[4096]{0}', space=vmem, size = 0x1000, scoped, tag = 'output window, operand 0, single buffered']
    %8 = vsyncpa [#allocation3], 0
    %9 = vsyncpa [#allocation4], 0
    // Predicated region
    $region2: #{tpu_custom_call.1} parent=1 // pred_check
      _
    $region3: #{tpu_custom_call.1} parent=1 // pred_check_branch
      %11 = sbr.rel (0) target = $region5
    $region4: #{tpu_custom_call.1} parent=1 // pred_region
      %s13 = ssub.s32 128, 128
      %14 = vsyncadd [#allocation3], %s13
      %s15 = sshll.u32 [#allocation2], 4
      %s16 = int_to_ptr.vmem [resolvable:$true] %s15
      %21 = dma.hbm_to_vmem [thread:$0]  %s0, 128, %s16, [#allocation3], 64, 64, 4
    $region5: #{tpu_custom_call.1} parent=1 // pred_fallthru
      _
    // Predicated region
    $region6: #{tpu_custom_call.1} parent=1 // pred_check
      _
    $region7: #{tpu_custom_call.1} parent=1 // pred_check_branch
      %23 = sbr.rel (0) target = $region9
    $region8: #{tpu_custom_call.1} parent=1 // pred_region
      _
    $region9: #{tpu_custom_call.1} parent=1 // pred_fallthru
      _
    // Predicated region
    $region10: #{tpu_custom_call.1} parent=1 // pred_check
      _
    $region11: #{tpu_custom_call.1} parent=1 // pred_check_branch
      %25 = sbr.rel (0) target = $region13
    $region12: #{tpu_custom_call.1} parent=1 // pred_region
      _
    $region13: #{tpu_custom_call.1} parent=1 // pred_fallthru
      _
    // Predicated region
    $region14: #{tpu_custom_call.1} parent=1 // pred_check
      _
    $region15: #{tpu_custom_call.1} parent=1 // pred_check_branch
      %27 = sbr.rel (0) target = $region17
    $region16: #{tpu_custom_call.1} parent=1 // pred_region
      %28 = dma.done [#allocation3], 128
    $region17: #{tpu_custom_call.1} parent=1 // pred_fallthru
      _
    %v29 = vld [vmem:[#allocation2] sm:$0xf]
    %v30 = vld [vmem:[#allocation2 + $0x4] sm:$0xf]
    %v31 = vunpack.c.l.bf16 %v29
    %v32 = vunpack.c.l.bf16 %v30
    %vm33 = vcmask 261120
    %v34 = vsel %vm33, %v31, 0.0
    %35 = vadd.xlane.f32.xlu0 %v34
    %v36 = vpop.xlane.xlu0 %35
    %v37 = vsel %vm33, %v32, 0.0
    %38 = vadd.xlane.f32.xlu0 %v37
    %v39 = vpop.xlane.xlu0 %38
    %v40 = vrcp.pop 32.0
    %v41 = vmul.f32 %v36, %v40
    %v42 = vmul.f32 %v39, %v40
    %v43 = vsub.f32 %v31, %v41
    %v44 = vsub.f32 %v32, %v42
    %v45 = vmul.f32 %v43, %v43
    %v46 = vmul.f32 %v44, %v44
    %v47 = vsel %vm33, %v45, 0.0
    %48 = vadd.xlane.f32.xlu0 %v47
    %v49 = vpop.xlane.xlu0 %48
    %v50 = vsel %vm33, %v46, 0.0
    %51 = vadd.xlane.f32.xlu0 %v50
    %v52 = vpop.xlane.xlu0 %51
    %v53 = vmul.f32 %v49, %v40
    %v54 = vmul.f32 %v52, %v40
    %v55 = vadd.f32 %v53, 1e-12
    %v56 = vadd.f32 %v54, 1e-12
    %v57 = vrsqrt.pop %v55
    %v58 = vrsqrt.pop %v56
    %v59 = vmul.f32 %v43, %v57
    %v60 = vmul.f32 %v44, %v58
    %v61 = vld [vmem:[%s1] sm:$0x1]
    %v63 = vlaneseq
    %v64 = vshrl.u32 %v63, 7
    %v65 = vsub.s32 0, %v64
    %v66 = vrot.slane %v61, %v65
    %v68 = vmul.f32 %v59, %v66
    %v69 = vmul.f32 %v60, %v66
    %v70 = vld [vmem:[%s2] sm:$0x1]
    %v72 = vlaneseq
    %v73 = vshrl.u32 %v72, 7
    %v74 = vsub.s32 0, %v73
    %v75 = vrot.slane %v70, %v74
    %v77 = vadd.f32 %v68, %v75
    %v78 = vadd.f32 %v69, %v75
    %v79 = vpack.c.bf16 %v78, %v77
    %v81 = vunpack.c.l.b16 %v79
    %v82 = vunpack.c.h.b16 %v79
    %v83 = vpack.c.b16 %v81, %v81
    %v84 = vpack.c.b16 %v82, %v82
    %vm87 = vcmask 257024
    %88 = vst.msk [vmem:[#allocation5] sm:$0xf] %vm87, %v83
    %89 = vst.msk [vmem:[#allocation5 + $0x4] sm:$0xf] %vm87, %v84
    // Predicated region
    $region18: #{tpu_custom_call.1} parent=1 // pred_check
      _
    $region19: #{tpu_custom_call.1} parent=1 // pred_check_branch
      %91 = sbr.rel (0) target = $region21
    $region20: #{tpu_custom_call.1} parent=1 // pred_region
      %s93 = ssub.s32 128, 128
      %94 = vsyncadd [#allocation4], %s93
      %s95 = sshll.u32 [#allocation5], 4
      %s96 = int_to_ptr.vmem [resolvable:$true] %s95
      %101 = dma.vmem_to_hbm [thread:$0]  %s96, 128, %s3, [#allocation4], 64, 64, 4
    $region21: #{tpu_custom_call.1} parent=1 // pred_fallthru
      _
    // Predicated region
    $region22: #{tpu_custom_call.1} parent=1 // pred_check
      _
    $region23: #{tpu_custom_call.1} parent=1 // pred_check_branch
      %103 = sbr.rel (0) target = $region25
    $region24: #{tpu_custom_call.1} parent=1 // pred_region
      %104 = dma.done [#allocation4], 128
    $region25: #{tpu_custom_call.1} parent=1 // pred_fallthru
      _
    %105 = vsyncpa [#allocation3], 1
    %106 = vsyncpa [#allocation4], 1

</llo_original>
